<compile_context>
chip_gen: v7x
topology: tpu7x:2x2x1
jax: 0.10.0
libtpu: 0.0.40
codegen_flags: <defaults>
</compile_context>

<pallas_src>
import functools

import jax
import jax.numpy as jnp
from jax import lax
from jax.experimental import pallas as pl
from jax.experimental.pallas import tpu as pltpu


def _round_up(v, m):
    return ((v + m - 1) // m) * m


def _usable_vmem_bytes():
    """Per-generation usable VMEM (capacity minus compiler headroom)."""
    cap = None
    try:
        info = pltpu.get_tpu_info()
        cap = getattr(info, "vmem_capacity_bytes", None)
    except Exception:
        cap = None
    if not cap:
        cap = 64 * 1024 * 1024          # conservative fallback (v7x-sized)
    return int(cap * 0.85)              # ~54 MiB on v7x, ~109 MiB on v5e/v6e


def _vmem_block_bytes(imgs, c_in, c_out, ckk, flat_len, cols):
    """(8,128)/(16,128)-padded VMEM footprint of one grid step's blocks."""
    x_blk = imgs * _round_up(c_in, 16) * _round_up(flat_len, 128) * 2    # bf16
    o_blk = imgs * _round_up(c_out, 8) * _round_up(cols, 128) * 4        # f32
    w_blk = _round_up(c_out, 16) * _round_up(ckk, 128) * 2               # bf16
    b_blk = _round_up(c_out, 8) * 128 * 4                                # f32
    rhs = _round_up(ckk, 16) * _round_up(cols, 128) * 2                  # bf16
    # Pipelined operands double-buffered; the rhs scratch is a single buffer.
    return 2 * (x_blk + o_blk + w_blk + b_blk) + rhs


@functools.partial(jax.jit, static_argnames=("kernel_size", "stride"))
def basic_conv(x, weight, bias, *, kernel_size, stride):
    """BasicConv(in_c, out_c, kernel_size, stride).forward(x) with the default
    flags (Conv2d + bias + ReLU).  NCHW in / NCHW out, like the PyTorch module.

    x:      (N, C_in, H, W)      float32
    weight: (C_out, C_in, K, K)  float32  (PyTorch Conv2d layout)
    bias:   (C_out,)             float32
    """
    n, c_in, h, w = x.shape
    c_out = weight.shape[0]
    k = kernel_size
    pad = k // 2                                   # same rule as the module
    h_out = (h + 2 * pad - k) // stride + 1
    w_out = (w + 2 * pad - k) // stride + 1
    h_pad = h + 2 * pad
    w_pad = w + 2 * pad
    ckk = c_in * k * k

    # Output columns computed per image: every output row keeps the full
    # padded width (W_out valid + (K-1) junk halo columns) so every tap is a
    # single contiguous slice and the spatial axis stays lane-dense.
    cols = h_out * w_pad

    # Flat-index bound of the shifted tap slices -> add a few zero rows at the
    # bottom so every slice stays strictly in bounds (no OOB reads).
    flat_needed = (k - 1) * (w_pad + 1) + stride * (cols - 1) + 1
    deficit = max(0, flat_needed - h_pad * w_pad)
    extra_rows = -(-deficit // w_pad)              # ceil div
    h_tot = h_pad + extra_rows
    flat_len = h_tot * w_pad

    # Single host pass over the activation: zero-pad + cast the MXU operand to
    # bf16 (accumulation is f32 inside the kernel).
    xp = jnp.pad(
        x, ((0, 0), (0, 0), (pad, pad + extra_rows), (pad, pad))
    ).astype(jnp.bfloat16)
    x_flat = xp.reshape(n, c_in, flat_len)         # free reshape, stays NCHW

    # Weight -> (C_out, K*K*C_in) bf16 so the whole conv is ONE MXU matmul
    # with contraction C_in*K*K.  Column order (kh, kw, c_in) matches how the
    # tap slices are stacked into the rhs scratch inside the kernel.
    w2d = jnp.transpose(weight, (0, 2, 3, 1)).reshape(c_out, ckk)
    w2d = w2d.astype(jnp.bfloat16)
    b_col = bias.astype(jnp.float32).reshape(c_out, 1)

    # --- images per grid step: amortize the ~600-cycle per-step overhead;
    # must divide N, fit the VMEM budget, and keep the static unroll small.
    usable = _usable_vmem_bytes()
    budget = int(usable * 0.75)
    imgs = 1
    for d in range(min(n, 8), 0, -1):
        if n % d == 0 and _vmem_block_bytes(d, c_in, c_out, ckk,
                                            flat_len, cols) <= budget:
            imgs = d
            break
    est = _vmem_block_bytes(imgs, c_in, c_out, ckk, flat_len, cols)
    vmem_limit = int(min(usable, max(16 << 20, int(est * 1.5) + (2 << 20))))

    out_dtype = x.dtype
    taps = [(kh, kw) for kh in range(k) for kw in range(k)]

    def kernel(x_ref, w_ref, b_ref, o_ref, rhs_ref):
        # x_ref:   (imgs, C_in, flat_len)  bf16  -- padded images, flattened
        # w_ref:   (C_out, C_in*K*K)       bf16  -- constant block, fetched once
        # b_ref:   (C_out, 1)              f32
        # o_ref:   (imgs, C_out, cols)     f32   -- lane-dense spatial axis
        # rhs_ref: (C_in*K*K, cols)        bf16  -- VMEM scratch (implicit im2col)
        for i in range(imgs):                       # static unroll (imgs <= 8)
            for t, (kh, kw) in enumerate(taps):     # static unroll: K*K taps
                base = kh * w_pad + kw              # static offset per tap
                if stride == 1:
                    sl = x_ref[i, :, pl.ds(base, cols)]
                else:
                    sl = x_ref[i, :, pl.ds(base, cols, stride=stride)]
                rhs_ref[t * c_in:(t + 1) * c_in, :] = sl
            # One MXU matmul: contraction = C_in*K*K (vs. K*K tiny dots before)
            acc = jnp.dot(w_ref[...], rhs_ref[...],
                          preferred_element_type=jnp.float32)
            acc = acc + b_ref[...]                                  # bias (f32)
            o_ref[i, :, :] = jnp.maximum(acc, 0.0).astype(o_ref.dtype)  # ReLU

    flops = 2 * n * h_out * w_out * ckk * c_out
    bytes_accessed = (n * c_in * flat_len * 2 + int(w2d.size) * 2
                      + int(b_col.size) * 4 + n * c_out * cols * 4)

    out = pl.pallas_call(
        kernel,
        out_shape=jax.ShapeDtypeStruct((n, c_out, cols), out_dtype),
        grid_spec=pltpu.PrefetchScalarGridSpec(
            num_scalar_prefetch=0,
            grid=(n // imgs,),                     # few, fat steps
            in_specs=[
                pl.BlockSpec((imgs, c_in, flat_len), lambda b: (b, 0, 0)),
                # Constant index maps: weight/bias are fetched once and stay
                # resident (pipeline_mode=pl.Buffered(1) would shave the spare
                # buffer once channel counts grow).
                pl.BlockSpec((c_out, ckk), lambda b: (0, 0)),
                pl.BlockSpec((c_out, 1), lambda b: (0, 0)),
            ],
            out_specs=pl.BlockSpec((imgs, c_out, cols), lambda b: (b, 0, 0)),
            scratch_shapes=[pltpu.VMEM((ckk, cols), jnp.bfloat16)],
        ),
        compiler_params=pltpu.CompilerParams(
            # Megacore hint (only matters on v7x); on v5e/v6e the grid is
            # already sized for the minimum number of steps.
            dimension_semantics=("parallel",),
            vmem_limit_bytes=vmem_limit,
        ),
        cost_estimate=pl.CostEstimate(flops=flops, transcendentals=0,
                                      bytes_accessed=bytes_accessed),
    )(x_flat, w2d, b_col)

    # (N, C_out, H_out*W_pad) is already NCHW-flat: split rows and drop the
    # (K-1) junk halo columns per row.  No transpose needed.
    return out.reshape(n, c_out, h_out, w_pad)[..., :w_out]


if __name__ == "__main__":
    key = jax.random.PRNGKey(0)
    kx, kw_, kb = jax.random.split(key, 3)

    N, C_IN, C_OUT, H, W, K, STRIDE = 2, 4, 8, 16, 16, 3, 1

    x = jax.random.normal(kx, (N, C_IN, H, W), dtype=jnp.float32)
    fan_in = C_IN * K * K
    weight = jax.random.normal(kw_, (C_OUT, C_IN, K, K),
                               dtype=jnp.float32) / jnp.sqrt(fan_in)
    bias = jax.random.normal(kb, (C_OUT,), dtype=jnp.float32) * 0.01

    out = basic_conv(x, weight, bias, kernel_size=K, stride=STRIDE)
    out = jax.block_until_ready(out)

    pad = K // 2

    def conv_ref(xq, wq):
        y = lax.conv_general_dilated(
            xq, wq, window_strides=(STRIDE, STRIDE),
            padding=((pad, pad), (pad, pad)),
            dimension_numbers=("NCHW", "OIHW", "NCHW"),
            precision=lax.Precision.HIGHEST)
        return jnp.maximum(y + bias.reshape(1, -1, 1, 1), 0.0)

    # (1) Reference with the same bf16 quantization of the MXU operands
    #     (kernel accumulates exact bf16 products in f32 -> tight match).
    ref_q = conv_ref(x.astype(jnp.bfloat16).astype(jnp.float32),
                     weight.astype(jnp.bfloat16).astype(jnp.float32))
    # (2) Full-f32 reference == the actual PyTorch BasicConv semantics; the
    #     only deviation is the bf16 quantization of the MXU operands.
    ref_f = conv_ref(x, weight)

    assert out.shape == ref_f.shape == (N, C_OUT, H, W), out.shape
    err_q = float(jnp.max(jnp.abs(out - ref_q)))
    err_f = float(jnp.max(jnp.abs(out - ref_f)))
    assert err_q < 2e-3, f"max abs err vs bf16-quantized ref {err_q}"
    assert err_f < 6e-2, f"max abs err vs f32 module {err_f}"

    print("KERNEL_OK")
</pallas_src>

<mosaic_0001>
module attributes {stable_mosaic.version = 11 : i64} {
  func.func @kernel(%arg0: i32, %arg1: memref<2x4x342xbf16, #tpu.memory_space<vmem>>, %arg2: memref<8x36xbf16, #tpu.memory_space<vmem>>, %arg3: memref<8x1xf32, #tpu.memory_space<vmem>>, %arg4: memref<2x8x288xf32, #tpu.memory_space<vmem>>, %arg5: memref<36x288xbf16, #tpu.memory_space<vmem>>) attributes {dimension_semantics = [#tpu.dimension_semantics<parallel>], iteration_bounds = array<i64: 1>, scalar_prefetch = 0 : i64, scratch_operands = 1 : i64, tpu.core_type = #tpu.core_type<tc>, window_params = [{transform_indices = @transform_0, window_bounds = array<i64: 2, 4, 342>}, {pipeline_mode = #tpu.pipeline_mode<synchronous>, transform_indices = @transform_1, window_bounds = array<i64: 8, 36>}, {pipeline_mode = #tpu.pipeline_mode<synchronous>, transform_indices = @transform_2, window_bounds = array<i64: 8, 1>}, {transform_indices = @transform_3, window_bounds = array<i64: 2, 8, 288>}]} {
    %c0 = arith.constant 0 : index
    %c0_0 = arith.constant 0 : index
    %c0_1 = arith.constant 0 : index
    %0 = vector.load %arg1[%c0, %c0_0, %c0_1] : memref<2x4x342xbf16, #tpu.memory_space<vmem>>, vector<1x4x288xbf16>
    %1 = vector.shape_cast %0 : vector<1x4x288xbf16> to vector<4x288xbf16>
    %c0_2 = arith.constant 0 : index
    %c0_3 = arith.constant 0 : index
    %2 = vector.load %arg5[%c0_2, %c0_3] : memref<36x288xbf16, #tpu.memory_space<vmem>>, vector<4x288xbf16>
    tpu.vector_store %arg5[%c0_2, %c0_3], %1 {strides = array<i32>} : memref<36x288xbf16, #tpu.memory_space<vmem>>, vector<4x288xbf16>,
    %c0_4 = arith.constant 0 : index
    %c0_5 = arith.constant 0 : index
    %c1 = arith.constant 1 : index
    %3 = vector.load %arg1[%c0_4, %c0_5, %c1] : memref<2x4x342xbf16, #tpu.memory_space<vmem>>, vector<1x4x288xbf16>
    %4 = vector.shape_cast %3 : vector<1x4x288xbf16> to vector<4x288xbf16>
    %c4 = arith.constant 4 : index
    %c0_6 = arith.constant 0 : index
    %5 = vector.load %arg5[%c4, %c0_6] : memref<36x288xbf16, #tpu.memory_space<vmem>>, vector<4x288xbf16>
    tpu.vector_store %arg5[%c4, %c0_6], %4 {strides = array<i32>} : memref<36x288xbf16, #tpu.memory_space<vmem>>, vector<4x288xbf16>,
    %c0_7 = arith.constant 0 : index
    %c0_8 = arith.constant 0 : index
    %c2 = arith.constant 2 : index
    %6 = vector.load %arg1[%c0_7, %c0_8, %c2] : memref<2x4x342xbf16, #tpu.memory_space<vmem>>, vector<1x4x288xbf16>
    %7 = vector.shape_cast %6 : vector<1x4x288xbf16> to vector<4x288xbf16>
    %c8 = arith.constant 8 : index
    %c0_9 = arith.constant 0 : index
    %8 = vector.load %arg5[%c8, %c0_9] : memref<36x288xbf16, #tpu.memory_space<vmem>>, vector<4x288xbf16>
    tpu.vector_store %arg5[%c8, %c0_9], %7 {strides = array<i32>} : memref<36x288xbf16, #tpu.memory_space<vmem>>, vector<4x288xbf16>,
    %c0_10 = arith.constant 0 : index
    %c0_11 = arith.constant 0 : index
    %c18 = arith.constant 18 : index
    %9 = vector.load %arg1[%c0_10, %c0_11, %c18] : memref<2x4x342xbf16, #tpu.memory_space<vmem>>, vector<1x4x288xbf16>
    %10 = vector.shape_cast %9 : vector<1x4x288xbf16> to vector<4x288xbf16>
    %c12 = arith.constant 12 : index
    %c0_12 = arith.constant 0 : index
    %11 = vector.load %arg5[%c12, %c0_12] : memref<36x288xbf16, #tpu.memory_space<vmem>>, vector<4x288xbf16>
    tpu.vector_store %arg5[%c12, %c0_12], %10 {strides = array<i32>} : memref<36x288xbf16, #tpu.memory_space<vmem>>, vector<4x288xbf16>,
    %c0_13 = arith.constant 0 : index
    %c0_14 = arith.constant 0 : index
    %c19 = arith.constant 19 : index
    %12 = vector.load %arg1[%c0_13, %c0_14, %c19] : memref<2x4x342xbf16, #tpu.memory_space<vmem>>, vector<1x4x288xbf16>
    %13 = vector.shape_cast %12 : vector<1x4x288xbf16> to vector<4x288xbf16>
    %c16 = arith.constant 16 : index
    %c0_15 = arith.constant 0 : index
    %14 = vector.load %arg5[%c16, %c0_15] : memref<36x288xbf16, #tpu.memory_space<vmem>>, vector<4x288xbf16>
    tpu.vector_store %arg5[%c16, %c0_15], %13 {strides = array<i32>} : memref<36x288xbf16, #tpu.memory_space<vmem>>, vector<4x288xbf16>,
    %c0_16 = arith.constant 0 : index
    %c0_17 = arith.constant 0 : index
    %c20 = arith.constant 20 : index
    %15 = vector.load %arg1[%c0_16, %c0_17, %c20] : memref<2x4x342xbf16, #tpu.memory_space<vmem>>, vector<1x4x288xbf16>
    %16 = vector.shape_cast %15 : vector<1x4x288xbf16> to vector<4x288xbf16>
    %c20_18 = arith.constant 20 : index
    %c0_19 = arith.constant 0 : index
    %17 = vector.load %arg5[%c20_18, %c0_19] : memref<36x288xbf16, #tpu.memory_space<vmem>>, vector<4x288xbf16>
    tpu.vector_store %arg5[%c20_18, %c0_19], %16 {strides = array<i32>} : memref<36x288xbf16, #tpu.memory_space<vmem>>, vector<4x288xbf16>,
    %c0_20 = arith.constant 0 : index
    %c0_21 = arith.constant 0 : index
    %c36 = arith.constant 36 : index
    %18 = vector.load %arg1[%c0_20, %c0_21, %c36] : memref<2x4x342xbf16, #tpu.memory_space<vmem>>, vector<1x4x288xbf16>
    %19 = vector.shape_cast %18 : vector<1x4x288xbf16> to vector<4x288xbf16>
    %c24 = arith.constant 24 : index
    %c0_22 = arith.constant 0 : index
    %20 = vector.load %arg5[%c24, %c0_22] : memref<36x288xbf16, #tpu.memory_space<vmem>>, vector<4x288xbf16>
    tpu.vector_store %arg5[%c24, %c0_22], %19 {strides = array<i32>} : memref<36x288xbf16, #tpu.memory_space<vmem>>, vector<4x288xbf16>,
    %c0_23 = arith.constant 0 : index
    %c0_24 = arith.constant 0 : index
    %c37 = arith.constant 37 : index
    %21 = vector.load %arg1[%c0_23, %c0_24, %c37] : memref<2x4x342xbf16, #tpu.memory_space<vmem>>, vector<1x4x288xbf16>
    %22 = vector.shape_cast %21 : vector<1x4x288xbf16> to vector<4x288xbf16>
    %c28 = arith.constant 28 : index
    %c0_25 = arith.constant 0 : index
    %23 = vector.load %arg5[%c28, %c0_25] : memref<36x288xbf16, #tpu.memory_space<vmem>>, vector<4x288xbf16>
    tpu.vector_store %arg5[%c28, %c0_25], %22 {strides = array<i32>} : memref<36x288xbf16, #tpu.memory_space<vmem>>, vector<4x288xbf16>,
    %c0_26 = arith.constant 0 : index
    %c0_27 = arith.constant 0 : index
    %c38 = arith.constant 38 : index
    %24 = vector.load %arg1[%c0_26, %c0_27, %c38] : memref<2x4x342xbf16, #tpu.memory_space<vmem>>, vector<1x4x288xbf16>
    %25 = vector.shape_cast %24 : vector<1x4x288xbf16> to vector<4x288xbf16>
    %c32 = arith.constant 32 : index
    %c0_28 = arith.constant 0 : index
    %26 = vector.load %arg5[%c32, %c0_28] : memref<36x288xbf16, #tpu.memory_space<vmem>>, vector<4x288xbf16>
    tpu.vector_store %arg5[%c32, %c0_28], %25 {strides = array<i32>} : memref<36x288xbf16, #tpu.memory_space<vmem>>, vector<4x288xbf16>,
    %c0_29 = arith.constant 0 : index
    %c0_30 = arith.constant 0 : index
    %27 = vector.load %arg2[%c0_29, %c0_30] : memref<8x36xbf16, #tpu.memory_space<vmem>>, vector<8x36xbf16>
    %c0_31 = arith.constant 0 : index
    %c0_32 = arith.constant 0 : index
    %28 = vector.load %arg5[%c0_31, %c0_32] : memref<36x288xbf16, #tpu.memory_space<vmem>>, vector<36x288xbf16>
    %cst = arith.constant dense<0.000000e+00> : vector<8x288xf32>
    %29 = tpu.matmul %27, %28, %cst {dimension_numbers = #tpu.dot_dimension_numbers<[1], [0], [0], [1], [0, 0, 1, 1], [], []>} : vector<8x36xbf16>, vector<36x288xbf16>, vector<8x288xf32> -> vector<8x288xf32>
    %c0_33 = arith.constant 0 : index
    %c0_34 = arith.constant 0 : index
    %30 = vector.load %arg3[%c0_33, %c0_34] : memref<8x1xf32, #tpu.memory_space<vmem>>, vector<8x1xf32>
    %31 = vector.broadcast %30 : vector<8x1xf32> to vector<8x288xf32>
    %32 = arith.addf %29, %31 : vector<8x288xf32>
    %cst_35 = arith.constant 0.000000e+00 : f32
    %33 = vector.broadcast %cst_35 : f32 to vector<8x288xf32>
    %34 = arith.maximumf %32, %33 : vector<8x288xf32>
    %c0_36 = arith.constant 0 : index
    %c0_37 = arith.constant 0 : index
    %c0_38 = arith.constant 0 : index
    %35 = vector.load %arg4[%c0_36, %c0_37, %c0_38] : memref<2x8x288xf32, #tpu.memory_space<vmem>>, vector<1x8x288xf32>
    %36 = vector.shape_cast %35 : vector<1x8x288xf32> to vector<8x288xf32>
    %37 = vector.shape_cast %34 : vector<8x288xf32> to vector<1x8x288xf32>
    tpu.vector_store %arg4[%c0_36, %c0_37, %c0_38], %37 {strides = array<i32>} : memref<2x8x288xf32, #tpu.memory_space<vmem>>, vector<1x8x288xf32>,
    %c1_39 = arith.constant 1 : index
    %c0_40 = arith.constant 0 : index
    %c0_41 = arith.constant 0 : index
    %38 = vector.load %arg1[%c1_39, %c0_40, %c0_41] : memref<2x4x342xbf16, #tpu.memory_space<vmem>>, vector<1x4x288xbf16>
    %39 = vector.shape_cast %38 : vector<1x4x288xbf16> to vector<4x288xbf16>
    %c0_42 = arith.constant 0 : index
    %c0_43 = arith.constant 0 : index
    %40 = vector.load %arg5[%c0_42, %c0_43] : memref<36x288xbf16, #tpu.memory_space<vmem>>, vector<4x288xbf16>
    tpu.vector_store %arg5[%c0_42, %c0_43], %39 {strides = array<i32>} : memref<36x288xbf16, #tpu.memory_space<vmem>>, vector<4x288xbf16>,
    %c1_44 = arith.constant 1 : index
    %c0_45 = arith.constant 0 : index
    %c1_46 = arith.constant 1 : index
    %41 = vector.load %arg1[%c1_44, %c0_45, %c1_46] : memref<2x4x342xbf16, #tpu.memory_space<vmem>>, vector<1x4x288xbf16>
    %42 = vector.shape_cast %41 : vector<1x4x288xbf16> to vector<4x288xbf16>
    %c4_47 = arith.constant 4 : index
    %c0_48 = arith.constant 0 : index
    %43 = vector.load %arg5[%c4_47, %c0_48] : memref<36x288xbf16, #tpu.memory_space<vmem>>, vector<4x288xbf16>
    tpu.vector_store %arg5[%c4_47, %c0_48], %42 {strides = array<i32>} : memref<36x288xbf16, #tpu.memory_space<vmem>>, vector<4x288xbf16>,
    %c1_49 = arith.constant 1 : index
    %c0_50 = arith.constant 0 : index
    %c2_51 = arith.constant 2 : index
    %44 = vector.load %arg1[%c1_49, %c0_50, %c2_51] : memref<2x4x342xbf16, #tpu.memory_space<vmem>>, vector<1x4x288xbf16>
    %45 = vector.shape_cast %44 : vector<1x4x288xbf16> to vector<4x288xbf16>
    %c8_52 = arith.constant 8 : index
    %c0_53 = arith.constant 0 : index
    %46 = vector.load %arg5[%c8_52, %c0_53] : memref<36x288xbf16, #tpu.memory_space<vmem>>, vector<4x288xbf16>
    tpu.vector_store %arg5[%c8_52, %c0_53], %45 {strides = array<i32>} : memref<36x288xbf16, #tpu.memory_space<vmem>>, vector<4x288xbf16>,
    %c1_54 = arith.constant 1 : index
    %c0_55 = arith.constant 0 : index
    %c18_56 = arith.constant 18 : index
    %47 = vector.load %arg1[%c1_54, %c0_55, %c18_56] : memref<2x4x342xbf16, #tpu.memory_space<vmem>>, vector<1x4x288xbf16>
    %48 = vector.shape_cast %47 : vector<1x4x288xbf16> to vector<4x288xbf16>
    %c12_57 = arith.constant 12 : index
    %c0_58 = arith.constant 0 : index
    %49 = vector.load %arg5[%c12_57, %c0_58] : memref<36x288xbf16, #tpu.memory_space<vmem>>, vector<4x288xbf16>
    tpu.vector_store %arg5[%c12_57, %c0_58], %48 {strides = array<i32>} : memref<36x288xbf16, #tpu.memory_space<vmem>>, vector<4x288xbf16>,
    %c1_59 = arith.constant 1 : index
    %c0_60 = arith.constant 0 : index
    %c19_61 = arith.constant 19 : index
    %50 = vector.load %arg1[%c1_59, %c0_60, %c19_61] : memref<2x4x342xbf16, #tpu.memory_space<vmem>>, vector<1x4x288xbf16>
    %51 = vector.shape_cast %50 : vector<1x4x288xbf16> to vector<4x288xbf16>
    %c16_62 = arith.constant 16 : index
    %c0_63 = arith.constant 0 : index
    %52 = vector.load %arg5[%c16_62, %c0_63] : memref<36x288xbf16, #tpu.memory_space<vmem>>, vector<4x288xbf16>
    tpu.vector_store %arg5[%c16_62, %c0_63], %51 {strides = array<i32>} : memref<36x288xbf16, #tpu.memory_space<vmem>>, vector<4x288xbf16>,
    %c1_64 = arith.constant 1 : index
    %c0_65 = arith.constant 0 : index
    %c20_66 = arith.constant 20 : index
    %53 = vector.load %arg1[%c1_64, %c0_65, %c20_66] : memref<2x4x342xbf16, #tpu.memory_space<vmem>>, vector<1x4x288xbf16>
    %54 = vector.shape_cast %53 : vector<1x4x288xbf16> to vector<4x288xbf16>
    %c20_67 = arith.constant 20 : index
    %c0_68 = arith.constant 0 : index
    %55 = vector.load %arg5[%c20_67, %c0_68] : memref<36x288xbf16, #tpu.memory_space<vmem>>, vector<4x288xbf16>
    tpu.vector_store %arg5[%c20_67, %c0_68], %54 {strides = array<i32>} : memref<36x288xbf16, #tpu.memory_space<vmem>>, vector<4x288xbf16>,
    %c1_69 = arith.constant 1 : index
    %c0_70 = arith.constant 0 : index
    %c36_71 = arith.constant 36 : index
    %56 = vector.load %arg1[%c1_69, %c0_70, %c36_71] : memref<2x4x342xbf16, #tpu.memory_space<vmem>>, vector<1x4x288xbf16>
    %57 = vector.shape_cast %56 : vector<1x4x288xbf16> to vector<4x288xbf16>
    %c24_72 = arith.constant 24 : index
    %c0_73 = arith.constant 0 : index
    %58 = vector.load %arg5[%c24_72, %c0_73] : memref<36x288xbf16, #tpu.memory_space<vmem>>, vector<4x288xbf16>
    tpu.vector_store %arg5[%c24_72, %c0_73], %57 {strides = array<i32>} : memref<36x288xbf16, #tpu.memory_space<vmem>>, vector<4x288xbf16>,
    %c1_74 = arith.constant 1 : index
    %c0_75 = arith.constant 0 : index
    %c37_76 = arith.constant 37 : index
    %59 = vector.load %arg1[%c1_74, %c0_75, %c37_76] : memref<2x4x342xbf16, #tpu.memory_space<vmem>>, vector<1x4x288xbf16>
    %60 = vector.shape_cast %59 : vector<1x4x288xbf16> to vector<4x288xbf16>
    %c28_77 = arith.constant 28 : index
    %c0_78 = arith.constant 0 : index
    %61 = vector.load %arg5[%c28_77, %c0_78] : memref<36x288xbf16, #tpu.memory_space<vmem>>, vector<4x288xbf16>
    tpu.vector_store %arg5[%c28_77, %c0_78], %60 {strides = array<i32>} : memref<36x288xbf16, #tpu.memory_space<vmem>>, vector<4x288xbf16>,
    %c1_79 = arith.constant 1 : index
    %c0_80 = arith.constant 0 : index
    %c38_81 = arith.constant 38 : index
    %62 = vector.load %arg1[%c1_79, %c0_80, %c38_81] : memref<2x4x342xbf16, #tpu.memory_space<vmem>>, vector<1x4x288xbf16>
    %63 = vector.shape_cast %62 : vector<1x4x288xbf16> to vector<4x288xbf16>
    %c32_82 = arith.constant 32 : index
    %c0_83 = arith.constant 0 : index
    %64 = vector.load %arg5[%c32_82, %c0_83] : memref<36x288xbf16, #tpu.memory_space<vmem>>, vector<4x288xbf16>
    tpu.vector_store %arg5[%c32_82, %c0_83], %63 {strides = array<i32>} : memref<36x288xbf16, #tpu.memory_space<vmem>>, vector<4x288xbf16>,
    %c0_84 = arith.constant 0 : index
    %c0_85 = arith.constant 0 : index
    %65 = vector.load %arg2[%c0_84, %c0_85] : memref<8x36xbf16, #tpu.memory_space<vmem>>, vector<8x36xbf16>
    %c0_86 = arith.constant 0 : index
    %c0_87 = arith.constant 0 : index
    %66 = vector.load %arg5[%c0_86, %c0_87] : memref<36x288xbf16, #tpu.memory_space<vmem>>, vector<36x288xbf16>
    %cst_88 = arith.constant dense<0.000000e+00> : vector<8x288xf32>
    %67 = tpu.matmul %65, %66, %cst_88 {dimension_numbers = #tpu.dot_dimension_numbers<[1], [0], [0], [1], [0, 0, 1, 1], [], []>} : vector<8x36xbf16>, vector<36x288xbf16>, vector<8x288xf32> -> vector<8x288xf32>
    %c0_89 = arith.constant 0 : index
    %c0_90 = arith.constant 0 : index
    %68 = vector.load %arg3[%c0_89, %c0_90] : memref<8x1xf32, #tpu.memory_space<vmem>>, vector<8x1xf32>
    %69 = vector.broadcast %68 : vector<8x1xf32> to vector<8x288xf32>
    %70 = arith.addf %67, %69 : vector<8x288xf32>
    %cst_91 = arith.constant 0.000000e+00 : f32
    %71 = vector.broadcast %cst_91 : f32 to vector<8x288xf32>
    %72 = arith.maximumf %70, %71 : vector<8x288xf32>
    %c1_92 = arith.constant 1 : index
    %c0_93 = arith.constant 0 : index
    %c0_94 = arith.constant 0 : index
    %73 = vector.load %arg4[%c1_92, %c0_93, %c0_94] : memref<2x8x288xf32, #tpu.memory_space<vmem>>, vector<1x8x288xf32>
    %74 = vector.shape_cast %73 : vector<1x8x288xf32> to vector<8x288xf32>
    %75 = vector.shape_cast %72 : vector<8x288xf32> to vector<1x8x288xf32>
    tpu.vector_store %arg4[%c1_92, %c0_93, %c0_94], %75 {strides = array<i32>} : memref<2x8x288xf32, #tpu.memory_space<vmem>>, vector<1x8x288xf32>,
    return
  }
  func.func @transform_0(%arg0: i32) -> (i32, i32, i32) {
    %c0_i32 = arith.constant 0 : i32
    %c0_i32_0 = arith.constant 0 : i32
    %c0_i32_1 = arith.constant 0 : i32
    return %arg0, %c0_i32, %c0_i32_0 : i32, i32, i32
  }
  func.func @transform_1(%arg0: i32) -> (i32, i32) {
    %c0_i32 = arith.constant 0 : i32
    %c0_i32_0 = arith.constant 0 : i32
    %c0_i32_1 = arith.constant 0 : i32
    return %c0_i32, %c0_i32_0 : i32, i32
  }
  func.func @transform_2(%arg0: i32) -> (i32, i32) {
    %c0_i32 = arith.constant 0 : i32
    %c0_i32_0 = arith.constant 0 : i32
    %c0_i32_1 = arith.constant 0 : i32
    return %c0_i32, %c0_i32_0 : i32, i32
  }
  func.func @transform_3(%arg0: i32) -> (i32, i32, i32) {
    %c0_i32 = arith.constant 0 : i32
    %c0_i32_0 = arith.constant 0 : i32
    %c0_i32_1 = arith.constant 0 : i32
    return %arg0, %c0_i32, %c0_i32_0 : i32, i32, i32
  }
}

</mosaic_0001>

<llo_original>
// kernel: basic_conv.1
$region0: #{basic_conv.1}
  #allocation0 [shape = 'u32[]', space=smem, size = 0x4, offset = 0x4, fixed_abs, tag = 'smem constant byte address 0x4 - core index']
  #allocation1 [shape = 'u32[144,128]{1,0:T(1,128)}', space=vmem, size = 0x12000, scoped, tag = 'internal scratch']
  #allocation2 [shape = 'bf16[36,288]{1,0:T(8,128)(2,1)}', space=vmem, size = 0x7800, scoped, tag = 'scratch operand']
  %s0 = inlined_call_operand.vmem [shape: bf16[2,4,342], index: 0, kind: input, shape index: {}]
  %s1 = inlined_call_operand.vmem [shape: bf16[8,36], index: 1, kind: input, shape index: {}]
  %s2 = inlined_call_operand.vmem [shape: f32[8,1], index: 2, kind: input, shape index: {}]
  %s3 = inlined_call_operand.vmem [shape: f32[2,8,288], index: 3, kind: output, shape index: {}]
  %s4 = sld [smem:[#allocation0]]
  $region22: #{basic_conv.1} parent=0
    _
  %s6 = ssub.s32 1, %s4
  %s7 = scalar_select 0, %s6, %s4
  // Predicated region
  $region2: #{basic_conv.1} parent=0 // pred_check
    _
  $region3: #{basic_conv.1} parent=0 // pred_check_branch
    %9 = sbr.rel (0) target = $region5
  $region4: #{basic_conv.1} parent=0 // pred_region
    _
  $region5: #{basic_conv.1} parent=0 // pred_fallthru
    _
  // Predicated region
  $region6: #{basic_conv.1} parent=0 // pred_check
    _
  $region7: #{basic_conv.1} parent=0 // pred_check_branch
    %11 = sbr.rel (0) target = $region9
  $region8: #{basic_conv.1} parent=0 // pred_region
    _
  $region9: #{basic_conv.1} parent=0 // pred_fallthru
    _
  // Predicated region
  $region10: #{basic_conv.1} parent=0 // pred_check
    _
  $region11: #{basic_conv.1} parent=0 // pred_check_branch
    %13 = sbr.rel (0) target = $region13
  $region12: #{basic_conv.1} parent=0 // pred_region
    _
  $region13: #{basic_conv.1} parent=0 // pred_fallthru
    _
  %v15 = vld [vmem:[%s0] sm:$0x3f]
  %v17 = vcombine.high %v15, %v15
  %v19 = vunpack.c.l.s4 1983009808
  %v20 = vunpack.c.0.s8 %v19
  %v21 = vlaneseq
  %v22 = vshrl.u32 %v21, 7
  %v23 = vsub.s32 %v20, %v22
  %v24 = vrot.slane %v15, %v23
  %v26 = vunpack.c.l.s4 1983009808
  %v27 = vunpack.c.0.s8 %v26
  %v28 = vlaneseq
  %v29 = vshrl.u32 %v28, 7
  %v30 = vsub.s32 %v27, %v29
  %v31 = vrot.slane %v17, %v30
  %34 = vst [vmem:[#allocation2] sm:$0x33] %v24
  %vm35 = vcmask 254976
  %36 = vst.msk [vmem:[#allocation2 + $0x8] sm:$0x3] %vm35, %v31
  %v37 = vld [vmem:[%s0] sm:$0x3f]
  %v39 = vcombine.low %v37, %v37
  %v41 = vunpack.c.l.s4 1983009808
  %v42 = vunpack.c.0.s8 %v41
  %v43 = vlaneseq
  %v44 = vshrl.u32 %v43, 7
  %v45 = vsub.s32 %v42, %v44
  %v46 = vrot.slane %v39, %v45
  %v48 = vunpack.c.l.s4 1983009808
  %v49 = vunpack.c.0.s8 %v48
  %v50 = vlaneseq
  %v51 = vshrl.u32 %v50, 7
  %v52 = vsub.s32 %v49, %v51
  %v53 = vrot.slane %v37, %v52
  %54 = vrot.lane.b32.xlu0 %v46, 127
  %v55 = vpop.permute.xlu0 %54
  %56 = vrot.lane.b32.xlu0 %v53, 127
  %v57 = vpop.permute.xlu0 %56
  %v58 = vrot.slane %v55, 4
  %v59 = vrot.slane %v57, 4
  %vm60 = vcmask 1043456
  %v61 = vsel %vm60, %v58, %v59
  %vm62 = vcmask 1039360
  %v63 = vsel %vm62, %v55, %v61
  %66 = vst [vmem:[#allocation2] sm:$0xcc] %v63
  %vm67 = vcmask 257026
  %68 = vst.msk [vmem:[#allocation2 + $0x8] sm:$0xc] %vm67, %v57
  %v69 = vld [vmem:[%s0] sm:$0x3f]
  %v71 = vcombine.high %v69, %v69
  %v73 = vunpack.c.l.s4 1983009808
  %v74 = vunpack.c.0.s8 %v73
  %v75 = vlaneseq
  %v76 = vshrl.u32 %v75, 7
  %v77 = vsub.s32 %v74, %v76
  %v78 = vrot.slane %v69, %v77
  %v80 = vunpack.c.l.s4 1983009808
  %v81 = vunpack.c.0.s8 %v80
  %v82 = vlaneseq
  %v83 = vshrl.u32 %v82, 7
  %v84 = vsub.s32 %v81, %v83
  %v85 = vrot.slane %v71, %v84
  %86 = vrot.lane.b32.xlu0 %v78, 126
  %v87 = vpop.permute.xlu0 %86
  %88 = vrot.lane.b32.xlu0 %v85, 126
  %v89 = vpop.permute.xlu0 %88
  %v90 = vrot.slane %v87, 4
  %v91 = vrot.slane %v89, 4
  %v92 = vsel %vm60, %v90, %v91
  %vm93 = vcmask 1031168
  %v94 = vsel %vm93, %v87, %v92
  %97 = vst [vmem:[#allocation2 + $0xc] sm:$0x33] %v94
  %98 = vst.msk [vmem:[#allocation2 + $0x14] sm:$0x3] %vm35, %v89
  %v99 = vld [vmem:[%s0] sm:$0x3f]
  %v101 = vcombine.low %v99, %v99
  %v103 = vunpack.c.l.s4 1983009808
  %v104 = vunpack.c.0.s8 %v103
  %v105 = vlaneseq
  %v106 = vshrl.u32 %v105, 7
  %v107 = vsub.s32 %v104, %v106
  %v108 = vrot.slane %v101, %v107
  %v110 = vunpack.c.l.s4 1983009808
  %v111 = vunpack.c.0.s8 %v110
  %v112 = vlaneseq
  %v113 = vshrl.u32 %v112, 7
  %v114 = vsub.s32 %v111, %v113
  %v115 = vrot.slane %v99, %v114
  %116 = vrot.lane.b32.xlu0 %v108, 110
  %v117 = vpop.permute.xlu0 %116
  %118 = vrot.lane.b32.xlu0 %v115, 110
  %v119 = vpop.permute.xlu0 %118
  %v120 = vrot.slane %v117, 4
  %v121 = vrot.slane %v119, 4
  %v122 = vsel %vm60, %v120, %v121
  %vm123 = vcmask 900096
  %v124 = vsel %vm123, %v117, %v122
  %127 = vst [vmem:[#allocation2 + $0xc] sm:$0xcc] %v124
  %128 = vst.msk [vmem:[#allocation2 + $0x14] sm:$0xc] %vm67, %v119
  %v129 = vld [vmem:[%s0] sm:$0x3f]
  %v131 = vcombine.high %v129, %v129
  %v133 = vunpack.c.l.s4 1983009808
  %v134 = vunpack.c.0.s8 %v133
  %v135 = vlaneseq
  %v136 = vshrl.u32 %v135, 7
  %v137 = vsub.s32 %v134, %v136
  %v138 = vrot.slane %v129, %v137
  %v140 = vunpack.c.l.s4 1983009808
  %v141 = vunpack.c.0.s8 %v140
  %v142 = vlaneseq
  %v143 = vshrl.u32 %v142, 7
  %v144 = vsub.s32 %v141, %v143
  %v145 = vrot.slane %v131, %v144
  %146 = vrot.lane.b32.xlu0 %v138, 109
  %v147 = vpop.permute.xlu0 %146
  %148 = vrot.lane.b32.xlu0 %v145, 109
  %v149 = vpop.permute.xlu0 %148
  %v150 = vrot.slane %v147, 4
  %v151 = vrot.slane %v149, 4
  %v152 = vsel %vm60, %v150, %v151
  %vm153 = vcmask 891904
  %v154 = vsel %vm153, %v147, %v152
  %157 = vst [vmem:[#allocation2 + $0x18] sm:$0x33] %v154
  %158 = vst.msk [vmem:[#allocation2 + $0x20] sm:$0x3] %vm35, %v149
  %v159 = vld [vmem:[%s0] sm:$0x3f]
  %v161 = vcombine.low %v159, %v159
  %v163 = vunpack.c.l.s4 1983009808
  %v164 = vunpack.c.0.s8 %v163
  %v165 = vlaneseq
  %v166 = vshrl.u32 %v165, 7
  %v167 = vsub.s32 %v164, %v166
  %v168 = vrot.slane %v161, %v167
  %v170 = vunpack.c.l.s4 1983009808
  %v171 = vunpack.c.0.s8 %v170
  %v172 = vlaneseq
  %v173 = vshrl.u32 %v172, 7
  %v174 = vsub.s32 %v171, %v173
  %v175 = vrot.slane %v159, %v174
  %176 = vrot.lane.b32.xlu0 %v168, 108
  %v177 = vpop.permute.xlu0 %176
  %178 = vrot.lane.b32.xlu0 %v175, 108
  %v179 = vpop.permute.xlu0 %178
  %v180 = vrot.slane %v177, 4
  %v181 = vrot.slane %v179, 4
  %v182 = vsel %vm60, %v180, %v181
  %vm183 = vcmask 883712
  %v184 = vsel %vm183, %v177, %v182
  %187 = vst [vmem:[#allocation2 + $0x18] sm:$0xcc] %v184
  %188 = vst.msk [vmem:[#allocation2 + $0x20] sm:$0xc] %vm67, %v179
  %v189 = vld [vmem:[%s0] sm:$0x3f]
  %v191 = vcombine.high %v189, %v189
  %v193 = vunpack.c.l.s4 1983009808
  %v194 = vunpack.c.0.s8 %v193
  %v195 = vlaneseq
  %v196 = vshrl.u32 %v195, 7
  %v197 = vsub.s32 %v194, %v196
  %v198 = vrot.slane %v189, %v197
  %v200 = vunpack.c.l.s4 1983009808
  %v201 = vunpack.c.0.s8 %v200
  %v202 = vlaneseq
  %v203 = vshrl.u32 %v202, 7
  %v204 = vsub.s32 %v201, %v203
  %v205 = vrot.slane %v191, %v204
  %206 = vrot.lane.b32.xlu0 %v198, 92
  %v207 = vpop.permute.xlu0 %206
  %208 = vrot.lane.b32.xlu0 %v205, 92
  %v209 = vpop.permute.xlu0 %208
  %v210 = vrot.slane %v207, 4
  %v211 = vrot.slane %v209, 4
  %v212 = vsel %vm60, %v210, %v211
  %vm213 = vcmask 752640
  %v214 = vsel %vm213, %v207, %v212
  %217 = vst [vmem:[#allocation2 + $0x24] sm:$0x33] %v214
  %218 = vst.msk [vmem:[#allocation2 + $0x2c] sm:$0x3] %vm35, %v209
  %v219 = vld [vmem:[%s0] sm:$0x3f]
  %v221 = vcombine.low %v219, %v219
  %v223 = vunpack.c.l.s4 1983009808
  %v224 = vunpack.c.0.s8 %v223
  %v225 = vlaneseq
  %v226 = vshrl.u32 %v225, 7
  %v227 = vsub.s32 %v224, %v226
  %v228 = vrot.slane %v221, %v227
  %v230 = vunpack.c.l.s4 1983009808
  %v231 = vunpack.c.0.s8 %v230
  %v232 = vlaneseq
  %v233 = vshrl.u32 %v232, 7
  %v234 = vsub.s32 %v231, %v233
  %v235 = vrot.slane %v219, %v234
  %236 = vrot.lane.b32.xlu0 %v228, 91
  %v237 = vpop.permute.xlu0 %236
  %238 = vrot.lane.b32.xlu0 %v235, 91
  %v239 = vpop.permute.xlu0 %238
  %v240 = vrot.slane %v237, 4
  %v241 = vrot.slane %v239, 4
  %v242 = vsel %vm60, %v240, %v241
  %vm243 = vcmask 744448
  %v244 = vsel %vm243, %v237, %v242
  %247 = vst [vmem:[#allocation2 + $0x24] sm:$0xcc] %v244
  %248 = vst.msk [vmem:[#allocation2 + $0x2c] sm:$0xc] %vm67, %v239
  %v249 = vld [vmem:[%s0] sm:$0x3f]
  %v251 = vcombine.high %v249, %v249
  %v253 = vunpack.c.l.s4 1983009808
  %v254 = vunpack.c.0.s8 %v253
  %v255 = vlaneseq
  %v256 = vshrl.u32 %v255, 7
  %v257 = vsub.s32 %v254, %v256
  %v258 = vrot.slane %v249, %v257
  %v260 = vunpack.c.l.s4 1983009808
  %v261 = vunpack.c.0.s8 %v260
  %v262 = vlaneseq
  %v263 = vshrl.u32 %v262, 7
  %v264 = vsub.s32 %v261, %v263
  %v265 = vrot.slane %v251, %v264
  %266 = vrot.lane.b32.xlu0 %v258, 90
  %v267 = vpop.permute.xlu0 %266
  %268 = vrot.lane.b32.xlu0 %v265, 90
  %v269 = vpop.permute.xlu0 %268
  %v270 = vrot.slane %v267, 4
  %v271 = vrot.slane %v269, 4
  %v272 = vsel %vm60, %v270, %v271
  %vm273 = vcmask 736256
  %v274 = vsel %vm273, %v267, %v272
  %277 = vst [vmem:[#allocation2 + $0x30] sm:$0x33] %v274
  %278 = vst.msk [vmem:[#allocation2 + $0x38] sm:$0x3] %vm35, %v269
  %v279 = vld [vmem:[%s1] sm:$0xf]
  %v280 = vld [vmem:[#allocation2] sm:$0xff]
  %v281 = vld [vmem:[#allocation2 + $0x8] sm:$0xf]
  %v282 = vld [vmem:[#allocation2 + $0xc] sm:$0xff]
  %v283 = vld [vmem:[#allocation2 + $0x14] sm:$0xf]
  %v284 = vld [vmem:[#allocation2 + $0x18] sm:$0xff]
  %v285 = vld [vmem:[#allocation2 + $0x20] sm:$0xf]
  %v286 = vld [vmem:[#allocation2 + $0x24] sm:$0xff]
  %v287 = vld [vmem:[#allocation2 + $0x2c] sm:$0xf]
  %v288 = vld [vmem:[#allocation2 + $0x30] sm:$0x33]
  %v289 = vld [vmem:[#allocation2 + $0x38] sm:$0x3]
  %v290 = vld [vmem:[%s2] sm:$0xff]
  %292 = vset.pattern.permute.xlu0 0
  %293 = vperm.xlu0 %292, %v290
  %v294 = vpop.permute.xlu0 %293
  %v306 = vunpack.c.l.b16 %v280
  %v307 = vunpack.c.h.b16 %v280
  %v308 = vunpack.c.l.b16 %v281
  %v309 = vunpack.c.l.b16 %v282
  %v310 = vunpack.c.h.b16 %v282
  %v311 = vunpack.c.l.b16 %v283
  %v312 = vunpack.c.l.b16 %v284
  %v313 = vunpack.c.h.b16 %v284
  %v314 = vunpack.c.l.b16 %v285
  %v315 = vunpack.c.l.b16 %v286
  %v316 = vunpack.c.h.b16 %v286
  %v317 = vunpack.c.l.b16 %v287
  %v318 = vunpack.c.l.b16 %v288
  %v319 = vunpack.c.h.b16 %v288
  %v320 = vunpack.c.l.b16 %v289
  %v321 = vpack.c.b16 %v309, %v306
  %v322 = vpack.c.b16 %v310, %v307
  %v323 = vpack.c.b16 %v311, %v308
  %v324 = vpack.c.b16 %v315, %v312
  %v325 = vpack.c.b16 %v316, %v313
  %v326 = vpack.c.b16 %v317, %v314
  %v327 = vpack.c.b16 %v318, %v318
  %v328 = vpack.c.b16 %v319, %v319
  %v329 = vpack.c.b16 %v320, %v320
  %vm336 = vcmask 293888
  %v338 = vsel %vm336, %v279, 0
  %vm340 = vcmask 1041408
  %v342 = vsel %vm340, %v327, 0
  %v345 = vsel %vm340, %v328, 0
  %v348 = vsel %vm340, %v329, 0
  %350 = vmatprep.subr.bf16.mxu0 %v322
  %351 = vmatpush1.bf16.msra.mxu0 %v321
  %352 = vmatprep.subr.bf16.mxu0 %v325
  %353 = vmatpush1.bf16.msra.mxu0 %v324
  %354 = vmatprep.subr.bf16.mxu0 %v345
  %355 = vmatpush1.bf16.msra.mxu0 %v342
  %356 = vmatprep.subr.bf16.mxu0 0
  %357 = vmatpush1.bf16.msra.mxu0 0
  %358 = vmatprep.subr.bf16.mxu0 0
  %359 = vmatpush1.bf16.msra.mxu0 0
  %360 = vmatprep.subr.bf16.mxu0 0
  %361 = vmatpush1.bf16.msra.mxu0 0
  %362 = vmatprep.subr.bf16.mxu0 0
  %363 = vmatpush1.bf16.msra.mxu0 0
  %364 = vmatprep.subr.bf16.mxu0 0
  %365 = vmatpush1.bf16.msra.mxu0 0
  %366 = vmatprep.subr.bf16.mxu0 0
  %367 = vmatpush1.bf16.msra.mxu0 0
  %368 = vmatprep.subr.bf16.mxu0 0
  %369 = vmatpush1.bf16.msra.mxu0 0
  %370 = vmatprep.subr.bf16.mxu0 0
  %371 = vmatpush1.bf16.msra.mxu0 0
  %372 = vmatprep.subr.bf16.mxu0 0
  %373 = vmatpush1.bf16.msra.mxu0 0
  %374 = vmatprep.subr.bf16.mxu0 0
  %375 = vmatpush1.bf16.msra.mxu0 0
  %376 = vmatprep.subr.bf16.mxu0 0
  %377 = vmatpush1.bf16.msra.mxu0 0
  %378 = vmatprep.subr.bf16.mxu0 0
  %379 = vmatpush1.bf16.msra.mxu0 0
  %380 = vmatprep.subr.bf16.mxu0 0
  %381 = vmatpush1.bf16.msra.mxu0 0
  %382 = vmatprep.mubr.bf16.mxu0 0
  %383 = vmatmul.mubr.bf16.gmra.mrb[0].mxu0 %v338
  %v384 = vpop.f32.mrb[0].mxu0
  %v385 = vadd.f32 %v294, %v384
  %v386 = vpop.f32.mrb[0].mxu0
  %v387 = vadd.f32 %v294, %v386
  %v388 = vpop.f32.mrb[0].mxu0
  %v389 = vpop.f32.mrb[0].mxu0
  %390 = vdwg.mxu0
  %391 = vmatprep.subr.bf16.mxu0 0
  %392 = vmatpush1.bf16.msra.mxu0 %v323
  %393 = vmatprep.subr.bf16.mxu0 0
  %394 = vmatpush1.bf16.msra.mxu0 %v326
  %395 = vmatprep.subr.bf16.mxu0 0
  %396 = vmatpush1.bf16.msra.mxu0 %v348
  %397 = vmatprep.subr.bf16.mxu0 0
  %398 = vmatpush1.bf16.msra.mxu0 0
  %399 = vmatprep.subr.bf16.mxu0 0
  %400 = vmatpush1.bf16.msra.mxu0 0
  %401 = vmatprep.subr.bf16.mxu0 0
  %402 = vmatpush1.bf16.msra.mxu0 0
  %403 = vmatprep.subr.bf16.mxu0 0
  %404 = vmatpush1.bf16.msra.mxu0 0
  %405 = vmatprep.subr.bf16.mxu0 0
  %406 = vmatpush1.bf16.msra.mxu0 0
  %407 = vmatprep.subr.bf16.mxu0 0
  %408 = vmatpush1.bf16.msra.mxu0 0
  %409 = vmatprep.subr.bf16.mxu0 0
  %410 = vmatpush1.bf16.msra.mxu0 0
  %411 = vmatprep.subr.bf16.mxu0 0
  %412 = vmatpush1.bf16.msra.mxu0 0
  %413 = vmatprep.subr.bf16.mxu0 0
  %414 = vmatpush1.bf16.msra.mxu0 0
  %415 = vmatprep.subr.bf16.mxu0 0
  %416 = vmatpush1.bf16.msra.mxu0 0
  %417 = vmatprep.subr.bf16.mxu0 0
  %418 = vmatpush1.bf16.msra.mxu0 0
  %419 = vmatprep.subr.bf16.mxu0 0
  %420 = vmatpush1.bf16.msra.mxu0 0
  %421 = vmatprep.subr.bf16.mxu0 0
  %422 = vmatpush1.bf16.msra.mxu0 0
  %423 = vmatprep.mubr.bf16.mxu0 0
  %424 = vmatmul.mubr.bf16.gmra.mrb[0].mxu0 %v338
  %v425 = vpop.f32.mrb[0].mxu0
  %v426 = vadd.f32 %v294, %v425
  %v427 = vpop.f32.mrb[0].mxu0
  %v428 = vpop.f32.mrb[0].mxu0
  %v429 = vpop.f32.mrb[0].mxu0
  %430 = vdwg.mxu0
  %v431 = vmax.f32 %v385, 0.0
  %v432 = vmax.f32 %v387, 0.0
  %v433 = vmax.f32 %v426, 0.0
  %434 = vst [vmem:[%s3] sm:$0xff] %v431
  %435 = vst [vmem:[%s3 + $0x8] sm:$0xff] %v432
  %vm436 = vcmask 261120
  %437 = vst.msk [vmem:[%s3 + $0x10] sm:$0xff] %vm436, %v433
  %s438 = scalar_lea.vmem %s0, 6
  %v439 = vld [vmem:[%s438] sm:$0x3f]
  %v441 = vcombine.high %v439, %v439
  %v443 = vunpack.c.l.s4 1983009808
  %v444 = vunpack.c.0.s8 %v443
  %v445 = vlaneseq
  %v446 = vshrl.u32 %v445, 7
  %v447 = vsub.s32 %v444, %v446
  %v448 = vrot.slane %v439, %v447
  %v450 = vunpack.c.l.s4 1983009808
  %v451 = vunpack.c.0.s8 %v450
  %v452 = vlaneseq
  %v453 = vshrl.u32 %v452, 7
  %v454 = vsub.s32 %v451, %v453
  %v455 = vrot.slane %v441, %v454
  %458 = vst [vmem:[#allocation2] sm:$0x33] %v448
  %459 = vst.msk [vmem:[#allocation2 + $0x8] sm:$0x3] %vm35, %v455
  %v460 = vld [vmem:[%s438] sm:$0x3f]
  %v462 = vcombine.low %v460, %v460
  %v464 = vunpack.c.l.s4 1983009808
  %v465 = vunpack.c.0.s8 %v464
  %v466 = vlaneseq
  %v467 = vshrl.u32 %v466, 7
  %v468 = vsub.s32 %v465, %v467
  %v469 = vrot.slane %v462, %v468
  %v471 = vunpack.c.l.s4 1983009808
  %v472 = vunpack.c.0.s8 %v471
  %v473 = vlaneseq
  %v474 = vshrl.u32 %v473, 7
  %v475 = vsub.s32 %v472, %v474
  %v476 = vrot.slane %v460, %v475
  %477 = vrot.lane.b32.xlu0 %v469, 127
  %v478 = vpop.permute.xlu0 %477
  %479 = vrot.lane.b32.xlu0 %v476, 127
  %v480 = vpop.permute.xlu0 %479
  %v481 = vrot.slane %v478, 4
  %v482 = vrot.slane %v480, 4
  %v483 = vsel %vm60, %v481, %v482
  %v484 = vsel %vm62, %v478, %v483
  %487 = vst [vmem:[#allocation2] sm:$0xcc] %v484
  %488 = vst.msk [vmem:[#allocation2 + $0x8] sm:$0xc] %vm67, %v480
  %v489 = vld [vmem:[%s438] sm:$0x3f]
  %v491 = vcombine.high %v489, %v489
  %v493 = vunpack.c.l.s4 1983009808
  %v494 = vunpack.c.0.s8 %v493
  %v495 = vlaneseq
  %v496 = vshrl.u32 %v495, 7
  %v497 = vsub.s32 %v494, %v496
  %v498 = vrot.slane %v489, %v497
  %v500 = vunpack.c.l.s4 1983009808
  %v501 = vunpack.c.0.s8 %v500
  %v502 = vlaneseq
  %v503 = vshrl.u32 %v502, 7
  %v504 = vsub.s32 %v501, %v503
  %v505 = vrot.slane %v491, %v504
  %506 = vrot.lane.b32.xlu0 %v498, 126
  %v507 = vpop.permute.xlu0 %506
  %508 = vrot.lane.b32.xlu0 %v505, 126
  %v509 = vpop.permute.xlu0 %508
  %v510 = vrot.slane %v507, 4
  %v511 = vrot.slane %v509, 4
  %v512 = vsel %vm60, %v510, %v511
  %v513 = vsel %vm93, %v507, %v512
  %516 = vst [vmem:[#allocation2 + $0xc] sm:$0x33] %v513
  %517 = vst.msk [vmem:[#allocation2 + $0x14] sm:$0x3] %vm35, %v509
  %v518 = vld [vmem:[%s438] sm:$0x3f]
  %v520 = vcombine.low %v518, %v518
  %v522 = vunpack.c.l.s4 1983009808
  %v523 = vunpack.c.0.s8 %v522
  %v524 = vlaneseq
  %v525 = vshrl.u32 %v524, 7
  %v526 = vsub.s32 %v523, %v525
  %v527 = vrot.slane %v520, %v526
  %v529 = vunpack.c.l.s4 1983009808
  %v530 = vunpack.c.0.s8 %v529
  %v531 = vlaneseq
  %v532 = vshrl.u32 %v531, 7
  %v533 = vsub.s32 %v530, %v532
  %v534 = vrot.slane %v518, %v533
  %535 = vrot.lane.b32.xlu0 %v527, 110
  %v536 = vpop.permute.xlu0 %535
  %537 = vrot.lane.b32.xlu0 %v534, 110
  %v538 = vpop.permute.xlu0 %537
  %v539 = vrot.slane %v536, 4
  %v540 = vrot.slane %v538, 4
  %v541 = vsel %vm60, %v539, %v540
  %v542 = vsel %vm123, %v536, %v541
  %545 = vst [vmem:[#allocation2 + $0xc] sm:$0xcc] %v542
  %546 = vst.msk [vmem:[#allocation2 + $0x14] sm:$0xc] %vm67, %v538
  %v547 = vld [vmem:[%s438] sm:$0x3f]
  %v549 = vcombine.high %v547, %v547
  %v551 = vunpack.c.l.s4 1983009808
  %v552 = vunpack.c.0.s8 %v551
  %v553 = vlaneseq
  %v554 = vshrl.u32 %v553, 7
  %v555 = vsub.s32 %v552, %v554
  %v556 = vrot.slane %v547, %v555
  %v558 = vunpack.c.l.s4 1983009808
  %v559 = vunpack.c.0.s8 %v558
  %v560 = vlaneseq
  %v561 = vshrl.u32 %v560, 7
  %v562 = vsub.s32 %v559, %v561
  %v563 = vrot.slane %v549, %v562
  %564 = vrot.lane.b32.xlu0 %v556, 109
  %v565 = vpop.permute.xlu0 %564
  %566 = vrot.lane.b32.xlu0 %v563, 109
  %v567 = vpop.permute.xlu0 %566
  %v568 = vrot.slane %v565, 4
  %v569 = vrot.slane %v567, 4
  %v570 = vsel %vm60, %v568, %v569
  %v571 = vsel %vm153, %v565, %v570
  %574 = vst [vmem:[#allocation2 + $0x18] sm:$0x33] %v571
  %575 = vst.msk [vmem:[#allocation2 + $0x20] sm:$0x3] %vm35, %v567
  %v576 = vld [vmem:[%s438] sm:$0x3f]
  %v578 = vcombine.low %v576, %v576
  %v580 = vunpack.c.l.s4 1983009808
  %v581 = vunpack.c.0.s8 %v580
  %v582 = vlaneseq
  %v583 = vshrl.u32 %v582, 7
  %v584 = vsub.s32 %v581, %v583
  %v585 = vrot.slane %v578, %v584
  %v587 = vunpack.c.l.s4 1983009808
  %v588 = vunpack.c.0.s8 %v587
  %v589 = vlaneseq
  %v590 = vshrl.u32 %v589, 7
  %v591 = vsub.s32 %v588, %v590
  %v592 = vrot.slane %v576, %v591
  %593 = vrot.lane.b32.xlu0 %v585, 108
  %v594 = vpop.permute.xlu0 %593
  %595 = vrot.lane.b32.xlu0 %v592, 108
  %v596 = vpop.permute.xlu0 %595
  %v597 = vrot.slane %v594, 4
  %v598 = vrot.slane %v596, 4
  %v599 = vsel %vm60, %v597, %v598
  %v600 = vsel %vm183, %v594, %v599
  %603 = vst [vmem:[#allocation2 + $0x18] sm:$0xcc] %v600
  %604 = vst.msk [vmem:[#allocation2 + $0x20] sm:$0xc] %vm67, %v596
  %v605 = vld [vmem:[%s438] sm:$0x3f]
  %v607 = vcombine.high %v605, %v605
  %v609 = vunpack.c.l.s4 1983009808
  %v610 = vunpack.c.0.s8 %v609
  %v611 = vlaneseq
  %v612 = vshrl.u32 %v611, 7
  %v613 = vsub.s32 %v610, %v612
  %v614 = vrot.slane %v605, %v613
  %v616 = vunpack.c.l.s4 1983009808
  %v617 = vunpack.c.0.s8 %v616
  %v618 = vlaneseq
  %v619 = vshrl.u32 %v618, 7
  %v620 = vsub.s32 %v617, %v619
  %v621 = vrot.slane %v607, %v620
  %622 = vrot.lane.b32.xlu0 %v614, 92
  %v623 = vpop.permute.xlu0 %622
  %624 = vrot.lane.b32.xlu0 %v621, 92
  %v625 = vpop.permute.xlu0 %624
  %v626 = vrot.slane %v623, 4
  %v627 = vrot.slane %v625, 4
  %v628 = vsel %vm60, %v626, %v627
  %v629 = vsel %vm213, %v623, %v628
  %632 = vst [vmem:[#allocation2 + $0x24] sm:$0x33] %v629
  %633 = vst.msk [vmem:[#allocation2 + $0x2c] sm:$0x3] %vm35, %v625
  %v634 = vld [vmem:[%s438] sm:$0x3f]
  %v636 = vcombine.low %v634, %v634
  %v638 = vunpack.c.l.s4 1983009808
  %v639 = vunpack.c.0.s8 %v638
  %v640 = vlaneseq
  %v641 = vshrl.u32 %v640, 7
  %v642 = vsub.s32 %v639, %v641
  %v643 = vrot.slane %v636, %v642
  %v645 = vunpack.c.l.s4 1983009808
  %v646 = vunpack.c.0.s8 %v645
  %v647 = vlaneseq
  %v648 = vshrl.u32 %v647, 7
  %v649 = vsub.s32 %v646, %v648
  %v650 = vrot.slane %v634, %v649
  %651 = vrot.lane.b32.xlu0 %v643, 91
  %v652 = vpop.permute.xlu0 %651
  %653 = vrot.lane.b32.xlu0 %v650, 91
  %v654 = vpop.permute.xlu0 %653
  %v655 = vrot.slane %v652, 4
  %v656 = vrot.slane %v654, 4
  %v657 = vsel %vm60, %v655, %v656
  %v658 = vsel %vm243, %v652, %v657
  %661 = vst [vmem:[#allocation2 + $0x24] sm:$0xcc] %v658
  %662 = vst.msk [vmem:[#allocation2 + $0x2c] sm:$0xc] %vm67, %v654
  %v663 = vld [vmem:[%s438] sm:$0x3f]
  %v665 = vcombine.high %v663, %v663
  %v667 = vunpack.c.l.s4 1983009808
  %v668 = vunpack.c.0.s8 %v667
  %v669 = vlaneseq
  %v670 = vshrl.u32 %v669, 7
  %v671 = vsub.s32 %v668, %v670
  %v672 = vrot.slane %v663, %v671
  %v674 = vunpack.c.l.s4 1983009808
  %v675 = vunpack.c.0.s8 %v674
  %v676 = vlaneseq
  %v677 = vshrl.u32 %v676, 7
  %v678 = vsub.s32 %v675, %v677
  %v679 = vrot.slane %v665, %v678
  %680 = vrot.lane.b32.xlu0 %v672, 90
  %v681 = vpop.permute.xlu0 %680
  %682 = vrot.lane.b32.xlu0 %v679, 90
  %v683 = vpop.permute.xlu0 %682
  %v684 = vrot.slane %v681, 4
  %v685 = vrot.slane %v683, 4
  %v686 = vsel %vm60, %v684, %v685
  %v687 = vsel %vm273, %v681, %v686
  %690 = vst [vmem:[#allocation2 + $0x30] sm:$0x33] %v687
  %691 = vst.msk [vmem:[#allocation2 + $0x38] sm:$0x3] %vm35, %v683
  %v692 = vld [vmem:[%s1] sm:$0xf]
  %v693 = vld [vmem:[#allocation2] sm:$0xff]
  %v694 = vld [vmem:[#allocation2 + $0x8] sm:$0xf]
  %v695 = vld [vmem:[#allocation2 + $0xc] sm:$0xff]
  %v696 = vld [vmem:[#allocation2 + $0x14] sm:$0xf]
  %v697 = vld [vmem:[#allocation2 + $0x18] sm:$0xff]
  %v698 = vld [vmem:[#allocation2 + $0x20] sm:$0xf]
  %v699 = vld [vmem:[#allocation2 + $0x24] sm:$0xff]
  %v700 = vld [vmem:[#allocation2 + $0x2c] sm:$0xf]
  %v701 = vld [vmem:[#allocation2 + $0x30] sm:$0x33]
  %v702 = vld [vmem:[#allocation2 + $0x38] sm:$0x3]
  %v703 = vld [vmem:[%s2] sm:$0xff]
  %705 = vset.pattern.permute.xlu0 0
  %706 = vperm.xlu0 %705, %v703
  %v707 = vpop.permute.xlu0 %706
  %v719 = vunpack.c.l.b16 %v693
  %v720 = vunpack.c.h.b16 %v693
  %v721 = vunpack.c.l.b16 %v694
  %v722 = vunpack.c.l.b16 %v695
  %v723 = vunpack.c.h.b16 %v695
  %v724 = vunpack.c.l.b16 %v696
  %v725 = vunpack.c.l.b16 %v697
  %v726 = vunpack.c.h.b16 %v697
  %v727 = vunpack.c.l.b16 %v698
  %v728 = vunpack.c.l.b16 %v699
  %v729 = vunpack.c.h.b16 %v699
  %v730 = vunpack.c.l.b16 %v700
  %v731 = vunpack.c.l.b16 %v701
  %v732 = vunpack.c.h.b16 %v701
  %v733 = vunpack.c.l.b16 %v702
  %v734 = vpack.c.b16 %v722, %v719
  %v735 = vpack.c.b16 %v723, %v720
  %v736 = vpack.c.b16 %v724, %v721
  %v737 = vpack.c.b16 %v728, %v725
  %v738 = vpack.c.b16 %v729, %v726
  %v739 = vpack.c.b16 %v730, %v727
  %v740 = vpack.c.b16 %v731, %v731
  %v741 = vpack.c.b16 %v732, %v732
  %v742 = vpack.c.b16 %v733, %v733
  %v750 = vsel %vm336, %v692, 0
  %v753 = vsel %vm340, %v740, 0
  %v756 = vsel %vm340, %v741, 0
  %v759 = vsel %vm340, %v742, 0
  %761 = vmatprep.subr.bf16.mxu0 %v735
  %762 = vmatpush1.bf16.msra.mxu0 %v734
  %763 = vmatprep.subr.bf16.mxu0 %v738
  %764 = vmatpush1.bf16.msra.mxu0 %v737
  %765 = vmatprep.subr.bf16.mxu0 %v756
  %766 = vmatpush1.bf16.msra.mxu0 %v753
  %767 = vmatprep.subr.bf16.mxu0 0
  %768 = vmatpush1.bf16.msra.mxu0 0
  %769 = vmatprep.subr.bf16.mxu0 0
  %770 = vmatpush1.bf16.msra.mxu0 0
  %771 = vmatprep.subr.bf16.mxu0 0
  %772 = vmatpush1.bf16.msra.mxu0 0
  %773 = vmatprep.subr.bf16.mxu0 0
  %774 = vmatpush1.bf16.msra.mxu0 0
  %775 = vmatprep.subr.bf16.mxu0 0
  %776 = vmatpush1.bf16.msra.mxu0 0
  %777 = vmatprep.subr.bf16.mxu0 0
  %778 = vmatpush1.bf16.msra.mxu0 0
  %779 = vmatprep.subr.bf16.mxu0 0
  %780 = vmatpush1.bf16.msra.mxu0 0
  %781 = vmatprep.subr.bf16.mxu0 0
  %782 = vmatpush1.bf16.msra.mxu0 0
  %783 = vmatprep.subr.bf16.mxu0 0
  %784 = vmatpush1.bf16.msra.mxu0 0
  %785 = vmatprep.subr.bf16.mxu0 0
  %786 = vmatpush1.bf16.msra.mxu0 0
  %787 = vmatprep.subr.bf16.mxu0 0
  %788 = vmatpush1.bf16.msra.mxu0 0
  %789 = vmatprep.subr.bf16.mxu0 0
  %790 = vmatpush1.bf16.msra.mxu0 0
  %791 = vmatprep.subr.bf16.mxu0 0
  %792 = vmatpush1.bf16.msra.mxu0 0
  %793 = vmatprep.mubr.bf16.mxu0 0
  %794 = vmatmul.mubr.bf16.gmra.mrb[0].mxu0 %v750
  %v795 = vpop.f32.mrb[0].mxu0
  %v796 = vadd.f32 %v707, %v795
  %v797 = vpop.f32.mrb[0].mxu0
  %v798 = vadd.f32 %v707, %v797
  %v799 = vpop.f32.mrb[0].mxu0
  %v800 = vpop.f32.mrb[0].mxu0
  %801 = vdwg.mxu0
  %802 = vmatprep.subr.bf16.mxu0 0
  %803 = vmatpush1.bf16.msra.mxu0 %v736
  %804 = vmatprep.subr.bf16.mxu0 0
  %805 = vmatpush1.bf16.msra.mxu0 %v739
  %806 = vmatprep.subr.bf16.mxu0 0
  %807 = vmatpush1.bf16.msra.mxu0 %v759
  %808 = vmatprep.subr.bf16.mxu0 0
  %809 = vmatpush1.bf16.msra.mxu0 0
  %810 = vmatprep.subr.bf16.mxu0 0
  %811 = vmatpush1.bf16.msra.mxu0 0
  %812 = vmatprep.subr.bf16.mxu0 0
  %813 = vmatpush1.bf16.msra.mxu0 0
  %814 = vmatprep.subr.bf16.mxu0 0
  %815 = vmatpush1.bf16.msra.mxu0 0
  %816 = vmatprep.subr.bf16.mxu0 0
  %817 = vmatpush1.bf16.msra.mxu0 0
  %818 = vmatprep.subr.bf16.mxu0 0
  %819 = vmatpush1.bf16.msra.mxu0 0
  %820 = vmatprep.subr.bf16.mxu0 0
  %821 = vmatpush1.bf16.msra.mxu0 0
  %822 = vmatprep.subr.bf16.mxu0 0
  %823 = vmatpush1.bf16.msra.mxu0 0
  %824 = vmatprep.subr.bf16.mxu0 0
  %825 = vmatpush1.bf16.msra.mxu0 0
  %826 = vmatprep.subr.bf16.mxu0 0
  %827 = vmatpush1.bf16.msra.mxu0 0
  %828 = vmatprep.subr.bf16.mxu0 0
  %829 = vmatpush1.bf16.msra.mxu0 0
  %830 = vmatprep.subr.bf16.mxu0 0
  %831 = vmatpush1.bf16.msra.mxu0 0
  %832 = vmatprep.subr.bf16.mxu0 0
  %833 = vmatpush1.bf16.msra.mxu0 0
  %834 = vmatprep.mubr.bf16.mxu0 0
  %835 = vmatmul.mubr.bf16.gmra.mrb[0].mxu0 %v750
  %v836 = vpop.f32.mrb[0].mxu0
  %v837 = vadd.f32 %v707, %v836
  %v838 = vpop.f32.mrb[0].mxu0
  %v839 = vpop.f32.mrb[0].mxu0
  %v840 = vpop.f32.mrb[0].mxu0
  %841 = vdwg.mxu0
  %v842 = vmax.f32 %v796, 0.0
  %v843 = vmax.f32 %v798, 0.0
  %v844 = vmax.f32 %v837, 0.0
  %s845 = scalar_lea.vmem %s3, 24
  %846 = vst [vmem:[%s845] sm:$0xff] %v842
  %847 = vst [vmem:[%s845 + $0x8] sm:$0xff] %v843
  %848 = vst.msk [vmem:[%s845 + $0x10] sm:$0xff] %vm436, %v844
  // Predicated region
  $region14: #{basic_conv.1} parent=0 // pred_check
    _
  $region15: #{basic_conv.1} parent=0 // pred_check_branch
    %850 = sbr.rel (0) target = $region17
  $region16: #{basic_conv.1} parent=0 // pred_region
    _
  $region17: #{basic_conv.1} parent=0 // pred_fallthru
    _
  // Predicated region
  $region18: #{basic_conv.1} parent=0 // pred_check
    _
  $region19: #{basic_conv.1} parent=0 // pred_check_branch
    %852 = sbr.rel (0) target = $region21
  $region20: #{basic_conv.1} parent=0 // pred_region
    _
  $region21: #{basic_conv.1} parent=0 // pred_fallthru
    _

</llo_original>
